<compile_context>
chip_gen: v6e
topology: v6e:2x2x1
jax: 0.10.0
libtpu: 0.0.40
codegen_flags: <defaults>
</compile_context>

<pallas_src>
import jax
import jax.numpy as jnp
from jax.experimental import pallas as pl
from jax.experimental.pallas import tpu as pltpu


def _fused_permute_linear_kernel(x_ref, w_ref, b_ref, o_ref):
    # x_ref: (Tf, K), w_ref: (K, Np), b_ref: (1, Np), o_ref: (Tf, Np)
    acc = jnp.dot(x_ref[...], w_ref[...], preferred_element_type=jnp.float32)
    o_ref[...] = (acc + b_ref[...]).astype(o_ref.dtype)


def _pick_frame_tile(nframes):
    # Largest tile that exactly divides nframes and is a multiple of 8.
    for t in (512, 256, 128, 64, 32, 16, 8):
        if nframes % t == 0:
            return t
    return nframes  # full-dim block (always legal)


def input_process_pallas(x, weight_kn, bias):
    """Fused permute(1,0,2) + Linear.

    x:         (bs, nframes, K)  float32, original (un-permuted) layout
    weight_kn: (K, Np)           float32, Np % 128 == 0 (lane-dense)
    bias:      (Np,)             float32
    returns:   (nframes, bs*Np)  == permuted linear output flattened on (bs, Np)
    """
    bs, nframes, K = x.shape
    K2, Np = weight_kn.shape
    assert K == K2
    assert Np % 128 == 0, "pad latent dim to a multiple of 128 before calling"

    Tf = _pick_frame_tile(nframes)
    grid = (nframes // Tf, bs)
    bias2d = bias.reshape(1, Np)

    return pl.pallas_call(
        _fused_permute_linear_kernel,
        out_shape=jax.ShapeDtypeStruct((nframes, bs * Np), x.dtype),
        grid_spec=pltpu.PrefetchScalarGridSpec(
            num_scalar_prefetch=0,
            grid=grid,
            in_specs=[
                # x block: one batch element (squeezed), Tf frames, full K.
                # index_map (b, s, 0) realizes the permute at the DMA level.
                pl.BlockSpec((None, Tf, K), lambda s, b: (b, s, 0)),
                # Weight / bias: constant index -> resident in VMEM.
                pl.BlockSpec((K, Np), lambda s, b: (0, 0)),
                pl.BlockSpec((1, Np), lambda s, b: (0, 0)),
            ],
            # Output row stripe s, lane-aligned column stripe b (offset b*Np).
            out_specs=pl.BlockSpec((Tf, Np), lambda s, b: (s, b)),
        ),
        compiler_params=pltpu.CompilerParams(
            dimension_semantics=("parallel", "parallel")),
    )(x, weight_kn, bias2d)


class InputProcessPallas:
    """JAX/Pallas re-implementation of the PyTorch InputProcess module."""

    def __init__(self, input_feats, latent_dim, key):
        self.input_feats = input_feats
        self.latent_dim = latent_dim
        kw, kb = jax.random.split(key)
        bound = 1.0 / (input_feats ** 0.5)
        # PyTorch stores weight as (latent_dim, input_feats); keep (K, N) for kernel.
        w_torch_layout = jax.random.uniform(
            kw, (latent_dim, input_feats), jnp.float32, -bound, bound)
        self.weight_kn = jnp.transpose(w_torch_layout)            # (K, N)
        self.bias = jax.random.uniform(
            kb, (latent_dim,), jnp.float32, -bound, bound)        # (N,)

        # Lane-dense (multiple-of-128) padded copies for the kernel.
        self._n_padded = ((latent_dim + 127) // 128) * 128
        pad = self._n_padded - latent_dim
        if pad:
            self._weight_padded = jnp.pad(self.weight_kn, ((0, 0), (0, pad)))
            self._bias_padded = jnp.pad(self.bias, (0, pad))
        else:
            self._weight_padded = self.weight_kn
            self._bias_padded = self.bias

    def __call__(self, x):
        # x: (bs, nframes, input_feats)  (original PyTorch input layout)
        bs, nframes, feats = x.shape
        assert feats == self.input_feats
        y2d = input_process_pallas(x, self._weight_padded, self._bias_padded)
        y = y2d.reshape(nframes, bs, self._n_padded)              # free reshape
        if self._n_padded != self.latent_dim:
            y = y[..., :self.latent_dim]
        return y                                                  # (nframes, bs, N)


def _reference(x, weight_kn, bias):
    x_perm = jnp.transpose(x, (1, 0, 2))
    return jnp.einsum("sbk,kn->sbn", x_perm, weight_kn) + bias


if __name__ == "__main__":
    key = jax.random.PRNGKey(0)
    k_x, k_p = jax.random.split(key)

    bs, nframes, input_feats, latent_dim = 2, 24, 32, 64
    x = jax.random.normal(k_x, (bs, nframes, input_feats), jnp.float32)

    module = InputProcessPallas(input_feats, latent_dim, k_p)
    out = module(x)
    out = jax.block_until_ready(out)

    assert out.shape == (nframes, bs, latent_dim), out.shape

    ref = _reference(x, module.weight_kn, module.bias)
    assert jnp.allclose(out, ref, atol=1e-4, rtol=1e-4), "mismatch vs reference"

    print("KERNEL_OK")
</pallas_src>

<mosaic_0001>
module attributes {stable_mosaic.version = 11 : i64} {
  func.func @_fused_permute_linear_kernel(%arg0: i32, %arg1: i32, %arg2: memref<1x8x32xf32, #tpu.memory_space<vmem>>, %arg3: memref<32x128xf32, #tpu.memory_space<vmem>>, %arg4: memref<1x128xf32, #tpu.memory_space<vmem>>, %arg5: memref<8x128xf32, #tpu.memory_space<vmem>>) attributes {dimension_semantics = [#tpu.dimension_semantics<parallel>, #tpu.dimension_semantics<parallel>], iteration_bounds = array<i64: 3, 2>, scalar_prefetch = 0 : i64, scratch_operands = 0 : i64, tpu.core_type = #tpu.core_type<tc>, window_params = [{transform_indices = @transform_0, window_bounds = array<i64: 1, 8, 32>}, {pipeline_mode = #tpu.pipeline_mode<synchronous>, transform_indices = @transform_1, window_bounds = array<i64: 32, 128>}, {pipeline_mode = #tpu.pipeline_mode<synchronous>, transform_indices = @transform_2, window_bounds = array<i64: 1, 128>}, {transform_indices = @transform_3, window_bounds = array<i64: 8, 128>}]} {
    %c0 = arith.constant 0 : index
    %c0_0 = arith.constant 0 : index
    %c0_1 = arith.constant 0 : index
    %0 = vector.load %arg2[%c0, %c0_0, %c0_1] : memref<1x8x32xf32, #tpu.memory_space<vmem>>, vector<1x8x32xf32>
    %1 = vector.shape_cast %0 : vector<1x8x32xf32> to vector<8x32xf32>
    %c0_2 = arith.constant 0 : index
    %c0_3 = arith.constant 0 : index
    %2 = vector.load %arg3[%c0_2, %c0_3] : memref<32x128xf32, #tpu.memory_space<vmem>>, vector<32x128xf32>
    %cst = arith.constant dense<0.000000e+00> : vector<8x128xf32>
    %3 = tpu.matmul %1, %2, %cst {dimension_numbers = #tpu.dot_dimension_numbers<[1], [0], [0], [1], [0, 0, 1, 1], [], []>} : vector<8x32xf32>, vector<32x128xf32>, vector<8x128xf32> -> vector<8x128xf32>
    %c0_4 = arith.constant 0 : index
    %c0_5 = arith.constant 0 : index
    %4 = vector.load %arg4[%c0_4, %c0_5] : memref<1x128xf32, #tpu.memory_space<vmem>>, vector<1x128xf32>
    %5 = vector.broadcast %4 : vector<1x128xf32> to vector<8x128xf32>
    %6 = arith.addf %3, %5 : vector<8x128xf32>
    %c0_6 = arith.constant 0 : index
    %c0_7 = arith.constant 0 : index
    %7 = vector.load %arg5[%c0_6, %c0_7] : memref<8x128xf32, #tpu.memory_space<vmem>>, vector<8x128xf32>
    tpu.vector_store %arg5[%c0_6, %c0_7], %6 {strides = array<i32>} : memref<8x128xf32, #tpu.memory_space<vmem>>, vector<8x128xf32>,
    return
  }
  func.func @transform_0(%arg0: i32, %arg1: i32) -> (i32, i32, i32) {
    %c0_i32 = arith.constant 0 : i32
    %c0_i32_0 = arith.constant 0 : i32
    return %arg1, %arg0, %c0_i32 : i32, i32, i32
  }
  func.func @transform_1(%arg0: i32, %arg1: i32) -> (i32, i32) {
    %c0_i32 = arith.constant 0 : i32
    %c0_i32_0 = arith.constant 0 : i32
    %c0_i32_1 = arith.constant 0 : i32
    return %c0_i32, %c0_i32_0 : i32, i32
  }
  func.func @transform_2(%arg0: i32, %arg1: i32) -> (i32, i32) {
    %c0_i32 = arith.constant 0 : i32
    %c0_i32_0 = arith.constant 0 : i32
    %c0_i32_1 = arith.constant 0 : i32
    return %c0_i32, %c0_i32_0 : i32, i32
  }
  func.func @transform_3(%arg0: i32, %arg1: i32) -> (i32, i32) {
    %c0_i32 = arith.constant 0 : i32
    return %arg0, %arg1 : i32, i32
  }
}

</mosaic_0001>

<llo_original>
// kernel: tpu_custom_call.1
$region0: #{tpu_custom_call.1}
  #allocation0 [shape = 'u32[]', space=smem, size = 0x4, offset = 0x4, fixed_abs, tag = 'smem constant byte address 0x4 - core index']
  #allocation1 [shape = 'u32[144,128]{1,0:T(1,128)}', space=vmem, size = 0x12000, scoped, tag = 'internal scratch']
  %s0 = inlined_call_operand.hbm [shape: f32[2,24,32], index: 0, kind: input, shape index: {}]
  %s1 = inlined_call_operand.hbm [shape: f32[32,128], index: 1, kind: input, shape index: {}]
  %s2 = inlined_call_operand.vmem [shape: f32[1,128], index: 2, kind: input, shape index: {}]
  %s3 = inlined_call_operand.hbm [shape: f32[24,256], index: 3, kind: output, shape index: {}]
  %s4 = sld [smem:[#allocation0]]
  $region53: #{tpu_custom_call.1} parent=0
    _
  %s6 = ssub.s32 1, %s4
  %s7 = scalar_select 0, %s6, %s4
  $region1: #{tpu_custom_call.1} parent=0
    #allocation2 [shape = 'u8[8192]{0}', space=vmem, size = 0x2000, scoped, tag = 'input window, operand 0']
    #allocation3 [shape = 's32[2]{0}', space=sflag, size = 0x8, scoped, tag = 'scoped memory for tpu_custom_call.1']
    #allocation4 [shape = 's32[2]{0}', space=sflag, size = 0x8, scoped, tag = 'scoped memory for tpu_custom_call.1']
    #allocation5 [shape = 'u8[16384]{0}', space=vmem, size = 0x4000, scoped, tag = 'input window, operand 1, single buffered']
    #allocation6 [shape = 's32[1]{0}', space=sflag, size = 0x4, scoped, tag = 'scoped memory for tpu_custom_call.1']
    #allocation7 [shape = 'u8[8192]{0}', space=vmem, size = 0x2000, scoped, tag = 'output window, operand 0']
    %8 = vsyncpa [#allocation3], 0
    %s9 = scalar_lea.sflag [#allocation3], 1
    %10 = vsyncpa %s9, 0
    %11 = vsyncpa [#allocation6], 0
    %12 = vsyncpa [#allocation4], 0
    %s13 = scalar_lea.sflag [#allocation4], 1
    %14 = vsyncpa %s13, 0
    loop: start=0, step=1, limit=8
    $region2: #{tpu_custom_call.1} parent=1 // loop_pre_header
      _
    $region3: #{tpu_custom_call.1} parent=1 // loop_header
      %s16 = sphi 0, %s20
      %p17 = scmp.ge.s32.totalorder %s16, 8
      %s23 = sphi 0, %s35
      %s24 = sphi 0, %s31
      %s25 = sphi 0, %s23
      %s26 = sphi 0, %s24
      %s27 = sphi 0, %s25
      %s28 = sphi 0, %s26
      %s40 = sphi 0, %s42
      %s43 = sphi 0, %s40
      %s44 = sphi 0, %s43
      %s60 = sphi 0, %s44
      %s64 = sphi 0, %s64
      %s66 = sphi 0, %s64
      %s67 = sphi 0, %s66
      %s81 = sphi 0, %s67
      %s85 = sphi 0, %s85
      %s87 = sphi 0, %s85
      %s88 = sphi 0, %s87
      %s102 = sphi 0, %s88
      %s110 = sphi 0, %s112
      %s113 = sphi 0, %s110
      %s114 = sphi 0, %s113
      %s130 = sphi 0, %s114
    $region4: #{tpu_custom_call.1} parent=1 // loop_header_branch
      %19 = sbr.rel (%p17) target = $region8
    $region5: #{tpu_custom_call.1} parent=1 // loop_body
      %s21 = ssub.s32 %s16, 1
      %s22 = ssub.s32 %s16, 2
      %s29 = sadd.s32 1, %s24
      %p30 = scmp.ge.s32.totalorder %s29, 2
      %s31 = scalar_select %p30, 0, %s29
      %s32 = sadd.s32 1, %s23
      %s33 = scalar_select %p30, %s32, %s23
      %p34 = scmp.ge.s32.totalorder %s33, 3
      %s35 = scalar_select %p34, 0, %s33
      %s36 = ssub.s32 %s24, %s31
      %s37 = ssub.s32 %s23, %s35
      %s38 = sor.u32 %s36, %s37
      %p39 = scmp.eq.s32.totalorder %s38, 0
      %s41 = sadd.s32 %s40, 1
      %s42 = scalar_select %p39, %s40, %s41
      %p45 = pneg %p39
      %p46 = scmp.eq.s32.totalorder %s16, 5
      %p47 = por %p45, %p46
      %p48 = scmp.ne.s32.totalorder %s40, %s43
      %p49 = scmp.eq.s32.totalorder %s16, 0
      %p50 = por %p48, %p49
      %p51 = scmp.ne.s32.totalorder %s40, %s43
      %p52 = scmp.eq.s32.totalorder %s21, 5
      %p53 = por %p51, %p52
      %p54 = scmp.ne.s32.totalorder %s43, %s44
      %p55 = scmp.eq.s32.totalorder %s21, 0
      %p56 = por %p54, %p55
      %p57 = scmp.ne.s32.totalorder %s43, %s44
      %p58 = scmp.eq.s32.totalorder %s22, 5
      %p59 = por %p57, %p58
      %p61 = scmp.ne.s32.totalorder %s44, %s60
      %p62 = scmp.eq.s32.totalorder %s22, 0
      %p63 = por %p61, %p62
      %s65 = sadd.s32 %s64, 1
      %p68 = scmp.eq.s32.totalorder %s16, 5
      %p69 = scmp.ne.s32.totalorder %s64, %s66
      %p70 = scmp.eq.s32.totalorder %s16, 0
      %p71 = por %p69, %p70
      %p72 = scmp.ne.s32.totalorder %s64, %s66
      %p73 = scmp.eq.s32.totalorder %s21, 5
      %p74 = por %p72, %p73
      %p75 = scmp.ne.s32.totalorder %s66, %s67
      %p76 = scmp.eq.s32.totalorder %s21, 0
      %p77 = por %p75, %p76
      %p78 = scmp.ne.s32.totalorder %s66, %s67
      %p79 = scmp.eq.s32.totalorder %s22, 5
      %p80 = por %p78, %p79
      %p82 = scmp.ne.s32.totalorder %s67, %s81
      %p83 = scmp.eq.s32.totalorder %s22, 0
      %p84 = por %p82, %p83
      %s86 = sadd.s32 %s85, 1
      %p89 = scmp.eq.s32.totalorder %s16, 5
      %p90 = scmp.ne.s32.totalorder %s85, %s87
      %p91 = scmp.eq.s32.totalorder %s16, 0
      %p92 = por %p90, %p91
      %p93 = scmp.ne.s32.totalorder %s85, %s87
      %p94 = scmp.eq.s32.totalorder %s21, 5
      %p95 = por %p93, %p94
      %p96 = scmp.ne.s32.totalorder %s87, %s88
      %p97 = scmp.eq.s32.totalorder %s21, 0
      %p98 = por %p96, %p97
      %p99 = scmp.ne.s32.totalorder %s87, %s88
      %p100 = scmp.eq.s32.totalorder %s22, 5
      %p101 = por %p99, %p100
      %p103 = scmp.ne.s32.totalorder %s88, %s102
      %p104 = scmp.eq.s32.totalorder %s22, 0
      %p105 = por %p103, %p104
      %s106 = ssub.s32 %s23, %s35
      %s107 = ssub.s32 %s24, %s31
      %s108 = sor.u32 %s106, %s107
      %p109 = scmp.eq.s32.totalorder %s108, 0
      %s111 = sadd.s32 %s110, 1
      %s112 = scalar_select %p109, %s110, %s111
      %p115 = pneg %p109
      %p116 = scmp.eq.s32.totalorder %s16, 5
      %p117 = por %p115, %p116
      %p118 = scmp.ne.s32.totalorder %s110, %s113
      %p119 = scmp.eq.s32.totalorder %s16, 0
      %p120 = por %p118, %p119
      %p121 = scmp.ne.s32.totalorder %s110, %s113
      %p122 = scmp.eq.s32.totalorder %s21, 5
      %p123 = por %p121, %p122
      %p124 = scmp.ne.s32.totalorder %s113, %s114
      %p125 = scmp.eq.s32.totalorder %s21, 0
      %p126 = por %p124, %p125
      %p127 = scmp.ne.s32.totalorder %s113, %s114
      %p128 = scmp.eq.s32.totalorder %s22, 5
      %p129 = por %p127, %p128
      %p131 = scmp.ne.s32.totalorder %s114, %s130
      %p132 = scmp.eq.s32.totalorder %s22, 0
      %p133 = por %p131, %p132
      %p134 = scmp.le.s32.totalorder 1, %s16
      %p135 = scmp.lt.s32.totalorder %s16, 7
      %p136 = pnand %p134, %p135
      %p137 = pneg %p136
      // Predicated region
      $region9: #{tpu_custom_call.1} parent=5 // pred_check
        _
      $region10: #{tpu_custom_call.1} parent=5 // pred_check_branch
        %139 = sbr.rel (%p136) target = $region12
      $region11: #{tpu_custom_call.1} parent=5 // pred_region
        %s140 = ssub.s32 %s16, 1
        // Predicated region
        $region13: #{tpu_custom_call.1} parent=11 // pred_check
          %p141 = pneg %p77
        $region14: #{tpu_custom_call.1} parent=11 // pred_check_branch
          %143 = sbr.rel (%p141) target = $region16
        $region15: #{tpu_custom_call.1} parent=11 // pred_region
          %s145 = ssub.s32 512, 512
          %146 = vsyncadd [#allocation6], %s145
          %s147 = sshll.u32 [#allocation5], 4
          %s148 = int_to_ptr.vmem [resolvable:$true] %s147
          %153 = dma.hbm_to_vmem [thread:$0]  %s1, 512, %s148, [#allocation6], 128, 128, 8
        $region16: #{tpu_custom_call.1} parent=11 // pred_fallthru
          _
        // Predicated region
        $region17: #{tpu_custom_call.1} parent=11 // pred_check
          %p154 = pneg %p98
        $region18: #{tpu_custom_call.1} parent=11 // pred_check_branch
          %156 = sbr.rel (%p154) target = $region20
        $region19: #{tpu_custom_call.1} parent=11 // pred_region
          _
        $region20: #{tpu_custom_call.1} parent=11 // pred_fallthru
          _
      $region12: #{tpu_custom_call.1} parent=5 // pred_fallthru
        _
      %p157 = scmp.lt.s32.totalorder %s16, 6
      // Predicated region
      $region21: #{tpu_custom_call.1} parent=5 // pred_check
        %p158 = pneg %p157
      $region22: #{tpu_custom_call.1} parent=5 // pred_check_branch
        %160 = sbr.rel (%p158) target = $region24
      $region23: #{tpu_custom_call.1} parent=5 // pred_region
        // Predicated region
        $region25: #{tpu_custom_call.1} parent=23 // pred_check
          %p161 = pneg %p50
        $region26: #{tpu_custom_call.1} parent=23 // pred_check_branch
          %163 = sbr.rel (%p161) target = $region28
        $region27: #{tpu_custom_call.1} parent=23 // pred_region
          %s164 = sand.u32 %s40, 1
          %s165 = scalar_lea.sflag [#allocation3], %s164
          %s166 = sand.u32 %s40, 1
          %s167 = smul.addr %s166, 8
          %s168 = scalar_lea.vmem [#allocation2], %s167
          %s170 = ssub.s32 128, 128
          %171 = vsyncadd %s165, %s170
          %s172 = smul.addr %s24, 3
          %s173 = sadd.s32 %s23, %s172
          %s174 = smul.addr %s173, 128
          %s175 = scalar_lea.hbm %s0, %s174
          %s177 = sshll.u32 %s168, 4
          %s178 = int_to_ptr.vmem [resolvable:$true] %s177
          %180 = dma.hbm_to_vmem [thread:$0]  %s175, 128, %s178, %s165
        $region28: #{tpu_custom_call.1} parent=23 // pred_fallthru
          _
      $region24: #{tpu_custom_call.1} parent=5 // pred_fallthru
        _
      %p181 = scmp.le.s32.totalorder 1, %s16
      %p182 = scmp.lt.s32.totalorder %s16, 7
      %p183 = pnand %p181, %p182
      %p184 = pneg %p183
      // Predicated region
      $region29: #{tpu_custom_call.1} parent=5 // pred_check
        _
      $region30: #{tpu_custom_call.1} parent=5 // pred_check_branch
        %186 = sbr.rel (%p183) target = $region32
      $region31: #{tpu_custom_call.1} parent=5 // pred_region
        %s187 = ssub.s32 %s16, 1
        %s188 = sand.u32 %s43, 1
        %s189 = scalar_lea.sflag [#allocation3], %s188
        %s190 = sand.u32 %s43, 1
        %s191 = smul.addr %s190, 8
        %s192 = scalar_lea.vmem [#allocation2], %s191
        // Predicated region
        $region33: #{tpu_custom_call.1} parent=31 // pred_check
          %p193 = pneg %p56
        $region34: #{tpu_custom_call.1} parent=31 // pred_check_branch
          %195 = sbr.rel (%p193) target = $region36
        $region35: #{tpu_custom_call.1} parent=31 // pred_region
          %196 = dma.done %s189, 128
        $region36: #{tpu_custom_call.1} parent=31 // pred_fallthru
          _
        // Predicated region
        $region37: #{tpu_custom_call.1} parent=31 // pred_check
          %p197 = pneg %p77
        $region38: #{tpu_custom_call.1} parent=31 // pred_check_branch
          %199 = sbr.rel (%p197) target = $region40
        $region39: #{tpu_custom_call.1} parent=31 // pred_region
          %200 = dma.done [#allocation6], 512
        $region40: #{tpu_custom_call.1} parent=31 // pred_fallthru
          _
        %s201 = sand.u32 %s43, 1
        %s202 = scalar_lea.sflag [#allocation3], %s201
        %s203 = sand.u32 %s43, 1
        %s204 = smul.addr %s203, 8
        %s205 = scalar_lea.vmem [#allocation2], %s204
        %p206 = pneg %p56
        %p207 = pneg %p53
        %p208 = pneg %p77
        %p209 = pneg %p74
        %p210 = pneg %p98
        %p211 = pneg %p95
        %p212 = pneg %p126
        %p213 = pneg %p123
        %s214 = sand.u32 %s113, 1
        %s215 = scalar_lea.sflag [#allocation4], %s214
        %s216 = sand.u32 %s113, 1
        %s217 = smul.addr %s216, 8
        %s218 = scalar_lea.vmem [#allocation7], %s217
        %v219 = vld [vmem:[%s192] sm:$0xff]
        %v220 = vld [vmem:[#allocation5] sm:$0xff]
        %v221 = vld [vmem:[#allocation5 + $0x8] sm:$0xff]
        %v222 = vld [vmem:[#allocation5 + $0x10] sm:$0xff]
        %v223 = vld [vmem:[#allocation5 + $0x18] sm:$0xff]
        %v224 = vld [vmem:[%s2] sm:$0x1]
        %v226 = vlaneseq
        %v227 = vshrl.u32 %v226, 7
        %v228 = vsub.s32 0, %v227
        %v229 = vrot.slane %v224, %v228
        %vm231 = vcmask 261120
        %v233 = vsel %vm231, %v219, 0
        %235 = vmatprep.subr.mxu0 0.0
        %236 = vmatpush1.msra.mxu0 0.0
        %237 = vmatprep.subr.mxu0 0.0
        %238 = vmatpush1.msra.mxu0 0.0
        %239 = vmatprep.subr.mxu0 0.0
        %240 = vmatpush1.msra.mxu0 0.0
        %241 = vmatprep.subr.mxu0 0.0
        %242 = vmatpush1.msra.mxu0 0.0
        %243 = vmatprep.subr.mxu0 0.0
        %244 = vmatpush1.msra.mxu0 0.0
        %245 = vmatprep.subr.mxu0 0.0
        %246 = vmatpush1.msra.mxu0 0.0
        %247 = vmatprep.subr.mxu0 0.0
        %248 = vmatpush1.msra.mxu0 0.0
        %249 = vmatprep.subr.mxu0 0.0
        %250 = vmatpush1.msra.mxu0 0.0
        %251 = vmatprep.subr.mxu0 0.0
        %252 = vmatpush1.msra.mxu0 0.0
        %253 = vmatprep.subr.mxu0 0.0
        %254 = vmatpush1.msra.mxu0 0.0
        %255 = vmatprep.subr.mxu0 0.0
        %256 = vmatpush1.msra.mxu0 0.0
        %257 = vmatprep.subr.mxu0 0.0
        %258 = vmatpush1.msra.mxu0 0.0
        %259 = vmatprep.subr.mxu0 0.0
        %260 = vmatpush1.msra.mxu0 %v223
        %261 = vmatprep.subr.mxu0 0.0
        %262 = vmatpush1.msra.mxu0 %v222
        %263 = vmatprep.subr.mxu0 0.0
        %264 = vmatpush1.msra.mxu0 %v221
        %265 = vmatprep.subr.mxu0 0.0
        %266 = vmatpush1.msra.mxu0 %v220
        %267 = vmatprep.subr.mxu0 0.0
        %268 = vmatpush2.msra.mxu0 0.0
        %269 = vmatprep.subr.mxu0 0.0
        %270 = vmatpush2.msra.mxu0 0.0
        %271 = vmatprep.subr.mxu0 0.0
        %272 = vmatpush2.msra.mxu0 0.0
        %273 = vmatprep.subr.mxu0 0.0
        %274 = vmatpush2.msra.mxu0 0.0
        %275 = vmatprep.subr.mxu0 0.0
        %276 = vmatpush2.msra.mxu0 0.0
        %277 = vmatprep.subr.mxu0 0.0
        %278 = vmatpush2.msra.mxu0 0.0
        %279 = vmatprep.subr.mxu0 0.0
        %280 = vmatpush2.msra.mxu0 0.0
        %281 = vmatprep.subr.mxu0 0.0
        %282 = vmatpush2.msra.mxu0 0.0
        %283 = vmatprep.subr.mxu0 0.0
        %284 = vmatpush2.msra.mxu0 0.0
        %285 = vmatprep.subr.mxu0 0.0
        %286 = vmatpush2.msra.mxu0 0.0
        %287 = vmatprep.subr.mxu0 0.0
        %288 = vmatpush2.msra.mxu0 0.0
        %289 = vmatprep.subr.mxu0 0.0
        %290 = vmatpush2.msra.mxu0 0.0
        %291 = vmatprep.subr.mxu0 0.0
        %292 = vmatpush2.msra.mxu0 0.0
        %293 = vmatprep.subr.mxu0 0.0
        %294 = vmatpush2.msra.mxu0 0.0
        %295 = vmatprep.subr.mxu0 0.0
        %296 = vmatpush2.msra.mxu0 0.0
        %297 = vmatprep.subr.mxu0 0.0
        %298 = vmatpush2.msra.mxu0 0.0
        %299 = vmatprep.mubr.f32.mxu0 0.0
        %300 = vmatmul.mubr.f32.gmra.mxu0 %v233
        %v301 = vpop.f32.mrf.mxu0
        %v302 = vadd.f32 %v229, %v301
        %v303 = vpop.f32.mrf.mxu0
        %304 = vdwg.mxu0
        %305 = vst [vmem:[%s218] sm:$0xff] %v302
        %s306 = sand.u32 %s113, 1
        %s307 = scalar_lea.sflag [#allocation4], %s306
        %s308 = sand.u32 %s113, 1
        %s309 = smul.addr %s308, 8
        %s310 = scalar_lea.vmem [#allocation7], %s309
        // Predicated region
        $region41: #{tpu_custom_call.1} parent=31 // pred_check
          %p311 = pneg %p123
        $region42: #{tpu_custom_call.1} parent=31 // pred_check_branch
          %313 = sbr.rel (%p311) target = $region44
        $region43: #{tpu_custom_call.1} parent=31 // pred_region
          %s315 = ssub.s32 128, 128
          %316 = vsyncadd %s307, %s315
          %s317 = smul.addr %s25, 2
          %s318 = sadd.s32 %s26, %s317
          %s319 = smul.addr %s318, 128
          %s320 = scalar_lea.hbm %s3, %s319
          %s322 = sshll.u32 %s310, 4
          %s323 = int_to_ptr.vmem [resolvable:$true] %s322
          %325 = dma.vmem_to_hbm [thread:$0]  %s323, 128, %s320, %s307
        $region44: #{tpu_custom_call.1} parent=31 // pred_fallthru
          _
      $region32: #{tpu_custom_call.1} parent=5 // pred_fallthru
        _
      %p326 = scmp.le.s32.totalorder 2, %s16
      // Predicated region
      $region45: #{tpu_custom_call.1} parent=5 // pred_check
        %p327 = pneg %p326
      $region46: #{tpu_custom_call.1} parent=5 // pred_check_branch
        %329 = sbr.rel (%p327) target = $region48
      $region47: #{tpu_custom_call.1} parent=5 // pred_region
        %s330 = ssub.s32 %s16, 2
        // Predicated region
        $region49: #{tpu_custom_call.1} parent=47 // pred_check
          %p331 = pneg %p129
        $region50: #{tpu_custom_call.1} parent=47 // pred_check_branch
          %333 = sbr.rel (%p331) target = $region52
        $region51: #{tpu_custom_call.1} parent=47 // pred_region
          %s334 = sand.u32 %s114, 1
          %s335 = scalar_lea.sflag [#allocation4], %s334
          %s336 = sand.u32 %s114, 1
          %s337 = smul.addr %s336, 8
          %s338 = scalar_lea.vmem [#allocation7], %s337
          %339 = dma.done %s335, 128
        $region52: #{tpu_custom_call.1} parent=47 // pred_fallthru
          _
      $region48: #{tpu_custom_call.1} parent=5 // pred_fallthru
        _
    $region6: #{tpu_custom_call.1} parent=1 // loop_footer
      %s20 = sadd.s32 1, %s16
    $region7: #{tpu_custom_call.1} parent=1 // loop_footer_branch
      %15 = sbr.rel target = $region3
    $region8: #{tpu_custom_call.1} parent=1 // loop_exit
      _
    %340 = vsyncpa [#allocation3], 1
    %s341 = scalar_lea.sflag [#allocation3], 1
    %342 = vsyncpa %s341, 1
    %343 = vsyncpa [#allocation6], 1
    %344 = vsyncpa [#allocation4], 1
    %s345 = scalar_lea.sflag [#allocation4], 1
    %346 = vsyncpa %s345, 1

</llo_original>
